<compile_context>
chip_gen: v7x
topology: tpu7x:2x2x1
jax: 0.10.0
libtpu: 0.0.40
codegen_flags: <defaults>
</compile_context>

<pallas_src>
import functools

import jax
import jax.numpy as jnp
from jax.experimental import pallas as pl
from jax.experimental.pallas import tpu as pltpu

HIDDEN_PAD = 128     # padded hidden size (lane width, MXU-aligned K for 2nd matmul)
CLASS_PAD = 128      # padded class count used *inside* the kernel (full-vreg softmax)
MAX_TB = 1024        # batch tile cap; a few MiB of VMEM, safe on v5e/v6e/v7x defaults
SPLIT_BATCH = 512    # above this force >= 2 grid steps (v7x 2nd TC via "parallel")
NEG_BIG = -1e30      # finite "minus infinity" for padded logits


def fcnn_kernel(x_ref, w1_ref, b1_ref, w2_ref, b2_ref, o_ref):
    # Hidden layer: h = relu(x @ W1 + b1); K = input_size (kept narrow on purpose),
    # N = 128 (lane aligned).
    x = x_ref[...]
    h = jnp.dot(x, w1_ref[...], preferred_element_type=jnp.float32) + b1_ref[...]
    h = jnp.maximum(h, 0.0)

    # Output layer: logits = h @ W2 + b2; K = 128, N = 128 (both MXU aligned).
    logits = jnp.dot(h, w2_ref[...], preferred_element_type=jnp.float32) + b2_ref[...]

    # Numerically stable softmax over the padded, lane-dense class axis.
    # Padded classes carry logit ~ -1e30, so exp(...) == 0 and they drop out of the sum.
    m = jnp.max(logits, axis=-1, keepdims=True)
    e = jnp.exp(logits - m)
    denom = jnp.sum(e, axis=-1, keepdims=True)
    r = pl.reciprocal(denom, approx=True)      # EUP vrcp slot (effectively free)
    r = r * (2.0 - denom * r)                  # one Newton-Raphson step -> f32 accurate
    probs = e * r

    # Store only the narrow (round_up(num_classes, 8)-wide) output slab; the 128-wide
    # padded classes never touch HBM.
    o_ref[...] = probs[:, : o_ref.shape[-1]].astype(o_ref.dtype)


def pad_params(w1, b1, w2, b2):
    """Pad params once: hidden -> 128 (zeros), classes -> 128 (zero W2 cols, -1e30 b2)."""
    in_size, hidden = w1.shape
    _, num_classes = w2.shape
    w1p = jnp.zeros((in_size, HIDDEN_PAD), jnp.float32).at[:, :hidden].set(w1)
    b1p = jnp.zeros((1, HIDDEN_PAD), jnp.float32).at[:, :hidden].set(b1)
    w2p = jnp.zeros((HIDDEN_PAD, CLASS_PAD), jnp.float32).at[:hidden, :num_classes].set(w2)
    b2p = jnp.full((1, CLASS_PAD), NEG_BIG, jnp.float32).at[:, :num_classes].set(b2)
    return w1p, b1p, w2p, b2p


def _round_up(n, m):
    return ((n + m - 1) // m) * m


def _choose_tile(b_eff):
    """Pick the batch tile (multiple of 8). Balanced tiles, capped at MAX_TB, and
    >= 2 grid steps above SPLIT_BATCH so v7x's second TensorCore is used."""
    if b_eff <= SPLIT_BATCH:
        return b_eff
    nsteps = max(2, pl.cdiv(b_eff, MAX_TB))
    return _round_up(pl.cdiv(b_eff, nsteps), 8)


@functools.partial(jax.jit, static_argnames=("num_classes",))
def fcnn_forward(x, w1p, b1p, w2p, b2p, *, num_classes):
    """x: (B, input_size) f32; padded params from pad_params.
    Returns (B, num_classes) softmax probabilities."""
    batch, in_size = x.shape
    class_out = min(CLASS_PAD, _round_up(num_classes, 8))

    # Only pad the batch when it isn't a multiple of 8 (sublane alignment); otherwise
    # avoid the extra HBM read+write pass over x entirely.
    b_eff = _round_up(batch, 8)
    if b_eff != batch:
        x = jnp.zeros((b_eff, in_size), x.dtype).at[:batch].set(x)

    tb = _choose_tile(b_eff)
    grid = (pl.cdiv(b_eff, tb),)   # partial last block is fine: rows are independent

    out = pl.pallas_call(
        fcnn_kernel,
        out_shape=jax.ShapeDtypeStruct((b_eff, class_out), jnp.float32),
        grid_spec=pltpu.PrefetchScalarGridSpec(
            num_scalar_prefetch=0,
            grid=grid,
            in_specs=[
                # x: streamed along batch only (feature dim deliberately NOT padded).
                pl.BlockSpec((tb, in_size), lambda i: (i, 0)),
                # Weights / biases: constant index_map -> resident in VMEM, one DMA total.
                pl.BlockSpec((in_size, HIDDEN_PAD), lambda i: (0, 0)),
                pl.BlockSpec((1, HIDDEN_PAD), lambda i: (0, 0)),
                pl.BlockSpec((HIDDEN_PAD, CLASS_PAD), lambda i: (0, 0)),
                pl.BlockSpec((1, CLASS_PAD), lambda i: (0, 0)),
            ],
            # Narrow output store: last dim equals the full array dim, so legal.
            out_specs=pl.BlockSpec((tb, class_out), lambda i: (i, 0)),
        ),
        compiler_params=pltpu.CompilerParams(dimension_semantics=("parallel",)),
    )(x, w1p, b1p, w2p, b2p)

    # Slice off batch padding and the (at most 7) extra zero-probability classes.
    return out[:batch, :num_classes]


def init_params(key, input_size, hidden_size, num_classes):
    """Deterministic init mimicking PyTorch nn.Linear default (U[-1/sqrt(fan_in), ...])."""
    k1, k2, k3, k4 = jax.random.split(key, 4)
    bound1 = 1.0 / jnp.sqrt(jnp.float32(input_size))
    bound2 = 1.0 / jnp.sqrt(jnp.float32(hidden_size))
    w1 = jax.random.uniform(k1, (input_size, hidden_size), jnp.float32, -bound1, bound1)
    b1 = jax.random.uniform(k2, (1, hidden_size), jnp.float32, -bound1, bound1)
    w2 = jax.random.uniform(k3, (hidden_size, num_classes), jnp.float32, -bound2, bound2)
    b2 = jax.random.uniform(k4, (1, num_classes), jnp.float32, -bound2, bound2)
    return w1, b1, w2, b2


def _reference(x, w1, b1, w2, b2):
    h = jnp.maximum(x @ w1 + b1, 0.0)
    return jax.nn.softmax(h @ w2 + b2, axis=1)


if __name__ == "__main__":
    input_size = 32
    max_nhsteps = 5
    hidden_size = 50
    num_classes = max_nhsteps + 1

    key = jax.random.PRNGKey(0)
    kx, kp, kx2 = jax.random.split(key, 3)
    w1, b1, w2, b2 = init_params(kp, input_size, hidden_size, num_classes)

    # Pad params once (prep-time, not per call).
    w1p, b1p, w2p, b2p = pad_params(w1, b1, w2, b2)

    # Case 1: small aligned batch (single grid step, no batch padding copy).
    batch = 8
    x = jax.random.normal(kx, (batch, input_size), jnp.float32)
    out = fcnn_forward(x, w1p, b1p, w2p, b2p, num_classes=num_classes)
    jax.block_until_ready(out)
    ref = _reference(x, w1, b1, w2, b2)
    assert out.shape == (batch, num_classes)
    assert jnp.allclose(out, ref, atol=1e-5, rtol=1e-5)
    assert jnp.allclose(jnp.sum(out, axis=1), 1.0, atol=1e-5)

    # Case 2: batch not a multiple of 8 (exercises the pad-to-8 path).
    batch2 = 13
    x2 = jax.random.normal(kx2, (batch2, input_size), jnp.float32)
    out2 = fcnn_forward(x2, w1p, b1p, w2p, b2p, num_classes=num_classes)
    jax.block_until_ready(out2)
    ref2 = _reference(x2, w1, b1, w2, b2)
    assert out2.shape == (batch2, num_classes)
    assert jnp.allclose(out2, ref2, atol=1e-5, rtol=1e-5)
    assert jnp.allclose(jnp.sum(out2, axis=1), 1.0, atol=1e-5)

    print("KERNEL_OK")
</pallas_src>

<mosaic_0001>
module attributes {stable_mosaic.version = 11 : i64} {
  func.func @fcnn_kernel(%arg0: i32, %arg1: memref<8x32xf32, #tpu.memory_space<vmem>>, %arg2: memref<32x128xf32, #tpu.memory_space<vmem>>, %arg3: memref<1x128xf32, #tpu.memory_space<vmem>>, %arg4: memref<128x128xf32, #tpu.memory_space<vmem>>, %arg5: memref<1x128xf32, #tpu.memory_space<vmem>>, %arg6: memref<8x8xf32, #tpu.memory_space<vmem>>) attributes {dimension_semantics = [#tpu.dimension_semantics<parallel>], iteration_bounds = array<i64: 1>, scalar_prefetch = 0 : i64, scratch_operands = 0 : i64, tpu.core_type = #tpu.core_type<tc>, window_params = [{transform_indices = @transform_0, window_bounds = array<i64: 8, 32>}, {pipeline_mode = #tpu.pipeline_mode<synchronous>, transform_indices = @transform_1, window_bounds = array<i64: 32, 128>}, {pipeline_mode = #tpu.pipeline_mode<synchronous>, transform_indices = @transform_2, window_bounds = array<i64: 1, 128>}, {pipeline_mode = #tpu.pipeline_mode<synchronous>, transform_indices = @transform_3, window_bounds = array<i64: 128, 128>}, {pipeline_mode = #tpu.pipeline_mode<synchronous>, transform_indices = @transform_4, window_bounds = array<i64: 1, 128>}, {transform_indices = @transform_5, window_bounds = array<i64: 8, 8>}]} {
    %c0 = arith.constant 0 : index
    %c0_0 = arith.constant 0 : index
    %0 = vector.load %arg1[%c0, %c0_0] : memref<8x32xf32, #tpu.memory_space<vmem>>, vector<8x32xf32>
    %c0_1 = arith.constant 0 : index
    %c0_2 = arith.constant 0 : index
    %1 = vector.load %arg2[%c0_1, %c0_2] : memref<32x128xf32, #tpu.memory_space<vmem>>, vector<32x128xf32>
    %cst = arith.constant dense<0.000000e+00> : vector<8x128xf32>
    %2 = tpu.matmul %0, %1, %cst {dimension_numbers = #tpu.dot_dimension_numbers<[1], [0], [0], [1], [0, 0, 1, 1], [], []>} : vector<8x32xf32>, vector<32x128xf32>, vector<8x128xf32> -> vector<8x128xf32>
    %c0_3 = arith.constant 0 : index
    %c0_4 = arith.constant 0 : index
    %3 = vector.load %arg3[%c0_3, %c0_4] : memref<1x128xf32, #tpu.memory_space<vmem>>, vector<1x128xf32>
    %4 = vector.broadcast %3 : vector<1x128xf32> to vector<8x128xf32>
    %5 = arith.addf %2, %4 : vector<8x128xf32>
    %cst_5 = arith.constant 0.000000e+00 : f32
    %6 = vector.broadcast %cst_5 : f32 to vector<8x128xf32>
    %7 = arith.maximumf %5, %6 : vector<8x128xf32>
    %c0_6 = arith.constant 0 : index
    %c0_7 = arith.constant 0 : index
    %8 = vector.load %arg4[%c0_6, %c0_7] : memref<128x128xf32, #tpu.memory_space<vmem>>, vector<128x128xf32>
    %cst_8 = arith.constant dense<0.000000e+00> : vector<8x128xf32>
    %9 = tpu.matmul %7, %8, %cst_8 {dimension_numbers = #tpu.dot_dimension_numbers<[1], [0], [0], [1], [0, 0, 1, 1], [], []>} : vector<8x128xf32>, vector<128x128xf32>, vector<8x128xf32> -> vector<8x128xf32>
    %c0_9 = arith.constant 0 : index
    %c0_10 = arith.constant 0 : index
    %10 = vector.load %arg5[%c0_9, %c0_10] : memref<1x128xf32, #tpu.memory_space<vmem>>, vector<1x128xf32>
    %11 = vector.broadcast %10 : vector<1x128xf32> to vector<8x128xf32>
    %12 = arith.addf %9, %11 : vector<8x128xf32>
    %cst_11 = arith.constant dense<0xFF800000> : vector<8xf32>
    %13 = vector.multi_reduction <maximumf>, %12, %cst_11 [1] : vector<8x128xf32> to vector<8xf32>
    %14 = vector.shape_cast %13 : vector<8xf32> to vector<8x1xf32>
    %15 = vector.broadcast %14 : vector<8x1xf32> to vector<8x128xf32>
    %16 = arith.subf %12, %15 : vector<8x128xf32>
    %17 = math.exp %16 : vector<8x128xf32>
    %cst_12 = arith.constant dense<0.000000e+00> : vector<8xf32>
    %18 = vector.multi_reduction <add>, %17, %cst_12 [1] : vector<8x128xf32> to vector<8xf32>
    %19 = vector.shape_cast %18 : vector<8xf32> to vector<8x1xf32>
    %20 = tpu.reciprocal %19 {approx = true} : vector<8x1xf32> -> vector<8x1xf32>
    %21 = arith.mulf %19, %20 : vector<8x1xf32>
    %cst_13 = arith.constant 2.000000e+00 : f32
    %22 = vector.broadcast %cst_13 : f32 to vector<8x1xf32>
    %23 = arith.subf %22, %21 : vector<8x1xf32>
    %24 = arith.mulf %20, %23 : vector<8x1xf32>
    %25 = vector.broadcast %24 : vector<8x1xf32> to vector<8x128xf32>
    %26 = arith.mulf %17, %25 : vector<8x128xf32>
    %27 = vector.extract_strided_slice %26 {offsets = [0, 0], sizes = [8, 8], strides = [1, 1]} : vector<8x128xf32> to vector<8x8xf32>
    %c0_14 = arith.constant 0 : index
    %c0_15 = arith.constant 0 : index
    %28 = vector.load %arg6[%c0_14, %c0_15] : memref<8x8xf32, #tpu.memory_space<vmem>>, vector<8x8xf32>
    tpu.vector_store %arg6[%c0_14, %c0_15], %27 {strides = array<i32>} : memref<8x8xf32, #tpu.memory_space<vmem>>, vector<8x8xf32>,
    return
  }
  func.func @transform_0(%arg0: i32) -> (i32, i32) {
    %c0_i32 = arith.constant 0 : i32
    %c0_i32_0 = arith.constant 0 : i32
    return %arg0, %c0_i32 : i32, i32
  }
  func.func @transform_1(%arg0: i32) -> (i32, i32) {
    %c0_i32 = arith.constant 0 : i32
    %c0_i32_0 = arith.constant 0 : i32
    %c0_i32_1 = arith.constant 0 : i32
    return %c0_i32, %c0_i32_0 : i32, i32
  }
  func.func @transform_2(%arg0: i32) -> (i32, i32) {
    %c0_i32 = arith.constant 0 : i32
    %c0_i32_0 = arith.constant 0 : i32
    %c0_i32_1 = arith.constant 0 : i32
    return %c0_i32, %c0_i32_0 : i32, i32
  }
  func.func @transform_3(%arg0: i32) -> (i32, i32) {
    %c0_i32 = arith.constant 0 : i32
    %c0_i32_0 = arith.constant 0 : i32
    %c0_i32_1 = arith.constant 0 : i32
    return %c0_i32, %c0_i32_0 : i32, i32
  }
  func.func @transform_4(%arg0: i32) -> (i32, i32) {
    %c0_i32 = arith.constant 0 : i32
    %c0_i32_0 = arith.constant 0 : i32
    %c0_i32_1 = arith.constant 0 : i32
    return %c0_i32, %c0_i32_0 : i32, i32
  }
  func.func @transform_5(%arg0: i32) -> (i32, i32) {
    %c0_i32 = arith.constant 0 : i32
    %c0_i32_0 = arith.constant 0 : i32
    return %arg0, %c0_i32 : i32, i32
  }
}

</mosaic_0001>

<llo_original>
// kernel: fcnn_forward.1
$region0: #{fcnn_forward.1}
  #allocation0 [shape = 'u32[]', space=smem, size = 0x4, offset = 0x4, fixed_abs, tag = 'smem constant byte address 0x4 - core index']
  #allocation1 [shape = 'u32[144,128]{1,0:T(1,128)}', space=vmem, size = 0x12000, scoped, tag = 'internal scratch']
  %s0 = inlined_call_operand.hbm [shape: f32[8,32], index: 0, kind: input, shape index: {}]
  %s1 = inlined_call_operand.hbm [shape: f32[32,128], index: 1, kind: input, shape index: {}]
  %s2 = inlined_call_operand.vmem [shape: f32[1,128], index: 2, kind: input, shape index: {}]
  %s3 = inlined_call_operand.hbm [shape: f32[128,128], index: 3, kind: input, shape index: {}]
  %s4 = inlined_call_operand.vmem [shape: f32[1,128], index: 4, kind: input, shape index: {}]
  %s5 = inlined_call_operand.hbm [shape: f32[8,8], index: 5, kind: output, shape index: {}]
  %s6 = sld [smem:[#allocation0]]
  $region42: #{fcnn_forward.1} parent=0
    _
  %s8 = ssub.s32 1, %s6
  %s9 = scalar_select 0, %s8, %s6
  $region1: #{fcnn_forward.1} parent=0
    #allocation2 [shape = 'u8[4096]{0}', space=vmem, size = 0x1000, scoped, tag = 'input window, operand 0, single buffered']
    #allocation3 [shape = 's32[1]{0}', space=sflag, size = 0x4, scoped, tag = 'scoped memory for fcnn_forward.1']
    #allocation4 [shape = 's32[1]{0}', space=sflag, size = 0x4, scoped, tag = 'scoped memory for fcnn_forward.1']
    #allocation5 [shape = 'u8[16384]{0}', space=vmem, size = 0x4000, scoped, tag = 'input window, operand 1, single buffered']
    #allocation6 [shape = 's32[1]{0}', space=sflag, size = 0x4, scoped, tag = 'scoped memory for fcnn_forward.1']
    #allocation7 [shape = 'u8[65536]{0}', space=vmem, size = 0x10000, scoped, tag = 'input window, operand 3, single buffered']
    #allocation8 [shape = 'u8[4096]{0}', space=vmem, size = 0x1000, scoped, tag = 'output window, operand 0, single buffered']
    %10 = vsyncpa [#allocation3], 0
    %11 = vsyncpa [#allocation6], 0
    %12 = vsyncpa [#allocation4], 0
    // Predicated region
    $region2: #{fcnn_forward.1} parent=1 // pred_check
      _
    $region3: #{fcnn_forward.1} parent=1 // pred_check_branch
      %14 = sbr.rel (0) target = $region5
    $region4: #{fcnn_forward.1} parent=1 // pred_region
      %s16 = ssub.s32 128, 128
      %17 = vsyncadd [#allocation3], %s16
      %s19 = sshll.u32 [#allocation2], 4
      %s20 = int_to_ptr.vmem [resolvable:$true] %s19
      %22 = dma.hbm_to_vmem [thread:$0]  %s0, 128, %s20, [#allocation3]
    $region5: #{fcnn_forward.1} parent=1 // pred_fallthru
      _
    // Predicated region
    $region6: #{fcnn_forward.1} parent=1 // pred_check
      _
    $region7: #{fcnn_forward.1} parent=1 // pred_check_branch
      %24 = sbr.rel (0) target = $region9
    $region8: #{fcnn_forward.1} parent=1 // pred_region
      %s26 = ssub.s32 512, 512
      %27 = vsyncadd [#allocation6], %s26
      %s28 = sshll.u32 [#allocation5], 4
      %s29 = int_to_ptr.vmem [resolvable:$true] %s28
      %34 = dma.hbm_to_vmem [thread:$0]  %s1, 512, %s29, [#allocation6], 128, 128, 8
    $region9: #{fcnn_forward.1} parent=1 // pred_fallthru
      _
    // Predicated region
    $region10: #{fcnn_forward.1} parent=1 // pred_check
      _
    $region11: #{fcnn_forward.1} parent=1 // pred_check_branch
      %36 = sbr.rel (0) target = $region13
    $region12: #{fcnn_forward.1} parent=1 // pred_region
      _
    $region13: #{fcnn_forward.1} parent=1 // pred_fallthru
      _
    // Predicated region
    $region14: #{fcnn_forward.1} parent=1 // pred_check
      _
    $region15: #{fcnn_forward.1} parent=1 // pred_check_branch
      %38 = sbr.rel (0) target = $region17
    $region16: #{fcnn_forward.1} parent=1 // pred_region
      %s40 = ssub.s32 2048, 2048
      %41 = vsyncadd [#allocation6], %s40
      %s42 = sshll.u32 [#allocation7], 4
      %s43 = int_to_ptr.vmem [resolvable:$true] %s42
      %48 = dma.hbm_to_vmem [thread:$0]  %s3, 2048, %s43, [#allocation6], 128, 128, 8
    $region17: #{fcnn_forward.1} parent=1 // pred_fallthru
      _
    // Predicated region
    $region18: #{fcnn_forward.1} parent=1 // pred_check
      _
    $region19: #{fcnn_forward.1} parent=1 // pred_check_branch
      %50 = sbr.rel (0) target = $region21
    $region20: #{fcnn_forward.1} parent=1 // pred_region
      _
    $region21: #{fcnn_forward.1} parent=1 // pred_fallthru
      _
    // Predicated region
    $region22: #{fcnn_forward.1} parent=1 // pred_check
      _
    $region23: #{fcnn_forward.1} parent=1 // pred_check_branch
      %52 = sbr.rel (0) target = $region25
    $region24: #{fcnn_forward.1} parent=1 // pred_region
      %53 = dma.done [#allocation3], 128
    $region25: #{fcnn_forward.1} parent=1 // pred_fallthru
      _
    // Predicated region
    $region26: #{fcnn_forward.1} parent=1 // pred_check
      _
    $region27: #{fcnn_forward.1} parent=1 // pred_check_branch
      %55 = sbr.rel (0) target = $region29
    $region28: #{fcnn_forward.1} parent=1 // pred_region
      %56 = dma.done [#allocation6], 512
    $region29: #{fcnn_forward.1} parent=1 // pred_fallthru
      _
    // Predicated region
    $region30: #{fcnn_forward.1} parent=1 // pred_check
      _
    $region31: #{fcnn_forward.1} parent=1 // pred_check_branch
      %58 = sbr.rel (0) target = $region33
    $region32: #{fcnn_forward.1} parent=1 // pred_region
      %59 = dma.done [#allocation6], 2048
    $region33: #{fcnn_forward.1} parent=1 // pred_fallthru
      _
    %v60 = vld [vmem:[#allocation2] sm:$0xff]
    %v61 = vld [vmem:[#allocation5] sm:$0xff]
    %v62 = vld [vmem:[#allocation5 + $0x8] sm:$0xff]
    %v63 = vld [vmem:[#allocation5 + $0x10] sm:$0xff]
    %v64 = vld [vmem:[#allocation5 + $0x18] sm:$0xff]
    %v65 = vld [vmem:[%s2] sm:$0x1]
    %v67 = vlaneseq
    %v68 = vshrl.u32 %v67, 7
    %v69 = vsub.s32 0, %v68
    %v70 = vrot.slane %v65, %v69
    %vm72 = vcmask 261120
    %v74 = vsel %vm72, %v60, 0
    %76 = vmatprep.subr.mxu0 0.0
    %77 = vmatpush1.msra.mxu0 %v61
    %78 = vmatprep.subr.mxu0 0.0
    %79 = vmatpush1.msra.mxu0 %v62
    %80 = vmatprep.subr.mxu0 0.0
    %81 = vmatpush1.msra.mxu0 %v63
    %82 = vmatprep.subr.mxu0 0.0
    %83 = vmatpush1.msra.mxu0 %v64
    %84 = vmatprep.subr.mxu0 0.0
    %85 = vmatpush1.msra.mxu0 0.0
    %86 = vmatprep.subr.mxu0 0.0
    %87 = vmatpush1.msra.mxu0 0.0
    %88 = vmatprep.subr.mxu0 0.0
    %89 = vmatpush1.msra.mxu0 0.0
    %90 = vmatprep.subr.mxu0 0.0
    %91 = vmatpush1.msra.mxu0 0.0
    %92 = vmatprep.subr.mxu0 0.0
    %93 = vmatpush1.msra.mxu0 0.0
    %94 = vmatprep.subr.mxu0 0.0
    %95 = vmatpush1.msra.mxu0 0.0
    %96 = vmatprep.subr.mxu0 0.0
    %97 = vmatpush1.msra.mxu0 0.0
    %98 = vmatprep.subr.mxu0 0.0
    %99 = vmatpush1.msra.mxu0 0.0
    %100 = vmatprep.subr.mxu0 0.0
    %101 = vmatpush1.msra.mxu0 0.0
    %102 = vmatprep.subr.mxu0 0.0
    %103 = vmatpush1.msra.mxu0 0.0
    %104 = vmatprep.subr.mxu0 0.0
    %105 = vmatpush1.msra.mxu0 0.0
    %106 = vmatprep.subr.mxu0 0.0
    %107 = vmatpush1.msra.mxu0 0.0
    %108 = vmatprep.subr.mxu0 0.0
    %109 = vmatpush1.msra.mxu0 0.0
    %110 = vmatprep.subr.mxu0 0.0
    %111 = vmatpush1.msra.mxu0 0.0
    %112 = vmatprep.subr.mxu0 0.0
    %113 = vmatpush1.msra.mxu0 0.0
    %114 = vmatprep.subr.mxu0 0.0
    %115 = vmatpush1.msra.mxu0 0.0
    %116 = vmatprep.subr.mxu0 0.0
    %117 = vmatpush1.msra.mxu0 0.0
    %118 = vmatprep.subr.mxu0 0.0
    %119 = vmatpush1.msra.mxu0 0.0
    %120 = vmatprep.subr.mxu0 0.0
    %121 = vmatpush1.msra.mxu0 0.0
    %122 = vmatprep.subr.mxu0 0.0
    %123 = vmatpush1.msra.mxu0 0.0
    %124 = vmatprep.subr.mxu0 0.0
    %125 = vmatpush1.msra.mxu0 0.0
    %126 = vmatprep.subr.mxu0 0.0
    %127 = vmatpush1.msra.mxu0 0.0
    %128 = vmatprep.subr.mxu0 0.0
    %129 = vmatpush1.msra.mxu0 0.0
    %130 = vmatprep.subr.mxu0 0.0
    %131 = vmatpush1.msra.mxu0 0.0
    %132 = vmatprep.subr.mxu0 0.0
    %133 = vmatpush1.msra.mxu0 0.0
    %134 = vmatprep.subr.mxu0 0.0
    %135 = vmatpush1.msra.mxu0 0.0
    %136 = vmatprep.subr.mxu0 0.0
    %137 = vmatpush1.msra.mxu0 0.0
    %138 = vmatprep.subr.mxu0 0.0
    %139 = vmatpush1.msra.mxu0 0.0
    %140 = vmatprep.mubr.f32.mxu0 0.0
    %141 = vmatmul.mubr.f32.gmra.mrb[0].mxu0 %v74
    %v142 = vpop.f32.mrb[0].mxu0
    %v143 = vadd.f32 %v70, %v142
    %v144 = vpop.f32.mrb[0].mxu0
    %145 = vdwg.mxu0
    %v146 = vmax.f32 %v143, 0.0
    %v147 = vld [vmem:[#allocation7] sm:$0xff]
    %v148 = vld [vmem:[#allocation7 + $0x8] sm:$0xff]
    %v149 = vld [vmem:[#allocation7 + $0x10] sm:$0xff]
    %v150 = vld [vmem:[#allocation7 + $0x18] sm:$0xff]
    %v151 = vld [vmem:[#allocation7 + $0x20] sm:$0xff]
    %v152 = vld [vmem:[#allocation7 + $0x28] sm:$0xff]
    %v153 = vld [vmem:[#allocation7 + $0x30] sm:$0xff]
    %v154 = vld [vmem:[#allocation7 + $0x38] sm:$0xff]
    %v155 = vld [vmem:[#allocation7 + $0x40] sm:$0xff]
    %v156 = vld [vmem:[#allocation7 + $0x48] sm:$0xff]
    %v157 = vld [vmem:[#allocation7 + $0x50] sm:$0xff]
    %v158 = vld [vmem:[#allocation7 + $0x58] sm:$0xff]
    %v159 = vld [vmem:[#allocation7 + $0x60] sm:$0xff]
    %v160 = vld [vmem:[#allocation7 + $0x68] sm:$0xff]
    %v161 = vld [vmem:[#allocation7 + $0x70] sm:$0xff]
    %v162 = vld [vmem:[#allocation7 + $0x78] sm:$0xff]
    %v163 = vld [vmem:[%s4] sm:$0x1]
    %v165 = vlaneseq
    %v166 = vshrl.u32 %v165, 7
    %v167 = vsub.s32 0, %v166
    %v168 = vrot.slane %v163, %v167
    %170 = vmatprep.subr.mxu0 0.0
    %171 = vmatpush1.msra.mxu0 %v147
    %172 = vmatprep.subr.mxu0 0.0
    %173 = vmatpush1.msra.mxu0 %v148
    %174 = vmatprep.subr.mxu0 0.0
    %175 = vmatpush1.msra.mxu0 %v149
    %176 = vmatprep.subr.mxu0 0.0
    %177 = vmatpush1.msra.mxu0 %v150
    %178 = vmatprep.subr.mxu0 0.0
    %179 = vmatpush1.msra.mxu0 %v151
    %180 = vmatprep.subr.mxu0 0.0
    %181 = vmatpush1.msra.mxu0 %v152
    %182 = vmatprep.subr.mxu0 0.0
    %183 = vmatpush1.msra.mxu0 %v153
    %184 = vmatprep.subr.mxu0 0.0
    %185 = vmatpush1.msra.mxu0 %v154
    %186 = vmatprep.subr.mxu0 0.0
    %187 = vmatpush1.msra.mxu0 %v155
    %188 = vmatprep.subr.mxu0 0.0
    %189 = vmatpush1.msra.mxu0 %v156
    %190 = vmatprep.subr.mxu0 0.0
    %191 = vmatpush1.msra.mxu0 %v157
    %192 = vmatprep.subr.mxu0 0.0
    %193 = vmatpush1.msra.mxu0 %v158
    %194 = vmatprep.subr.mxu0 0.0
    %195 = vmatpush1.msra.mxu0 %v159
    %196 = vmatprep.subr.mxu0 0.0
    %197 = vmatpush1.msra.mxu0 %v160
    %198 = vmatprep.subr.mxu0 0.0
    %199 = vmatpush1.msra.mxu0 %v161
    %200 = vmatprep.subr.mxu0 0.0
    %201 = vmatpush1.msra.mxu0 %v162
    %202 = vmatprep.subr.mxu0 0.0
    %203 = vmatpush1.msra.mxu0 0.0
    %204 = vmatprep.subr.mxu0 0.0
    %205 = vmatpush1.msra.mxu0 0.0
    %206 = vmatprep.subr.mxu0 0.0
    %207 = vmatpush1.msra.mxu0 0.0
    %208 = vmatprep.subr.mxu0 0.0
    %209 = vmatpush1.msra.mxu0 0.0
    %210 = vmatprep.subr.mxu0 0.0
    %211 = vmatpush1.msra.mxu0 0.0
    %212 = vmatprep.subr.mxu0 0.0
    %213 = vmatpush1.msra.mxu0 0.0
    %214 = vmatprep.subr.mxu0 0.0
    %215 = vmatpush1.msra.mxu0 0.0
    %216 = vmatprep.subr.mxu0 0.0
    %217 = vmatpush1.msra.mxu0 0.0
    %218 = vmatprep.subr.mxu0 0.0
    %219 = vmatpush1.msra.mxu0 0.0
    %220 = vmatprep.subr.mxu0 0.0
    %221 = vmatpush1.msra.mxu0 0.0
    %222 = vmatprep.subr.mxu0 0.0
    %223 = vmatpush1.msra.mxu0 0.0
    %224 = vmatprep.subr.mxu0 0.0
    %225 = vmatpush1.msra.mxu0 0.0
    %226 = vmatprep.subr.mxu0 0.0
    %227 = vmatpush1.msra.mxu0 0.0
    %228 = vmatprep.subr.mxu0 0.0
    %229 = vmatpush1.msra.mxu0 0.0
    %230 = vmatprep.subr.mxu0 0.0
    %231 = vmatpush1.msra.mxu0 0.0
    %232 = vmatprep.subr.mxu0 0.0
    %233 = vmatpush1.msra.mxu0 0.0
    %234 = vmatprep.mubr.f32.mxu0 0.0
    %235 = vmatmul.mubr.f32.gmra.mrb[0].mxu0 %v146
    %v236 = vpop.f32.mrb[0].mxu0
    %v237 = vadd.f32 %v168, %v236
    %v238 = vpop.f32.mrb[0].mxu0
    %239 = vdwg.mxu0
    %240 = vmax.xlane.f32.xlu0 %v237
    %v241 = vpop.xlane.xlu0 %240
    %v242 = vsub.f32 %v237, %v241
    %v243 = vmul.f32 %v242, 1.442695
    %v244 = vpow.pop %v243
    %245 = vadd.xlane.f32.xlu0 %v244
    %v246 = vpop.xlane.xlu0 %245
    %v247 = vrcp.pop %v246
    %v248 = vmul.f32 %v246, %v247
    %v249 = vsub.f32 2.0, %v248
    %v250 = vmul.f32 %v247, %v249
    %v251 = vmul.f32 %v244, %v250
    %vm252 = vcmask 64512
    %253 = vst.msk [vmem:[#allocation8] sm:$0xff] %vm252, %v251
    // Predicated region
    $region34: #{fcnn_forward.1} parent=1 // pred_check
      _
    $region35: #{fcnn_forward.1} parent=1 // pred_check_branch
      %255 = sbr.rel (0) target = $region37
    $region36: #{fcnn_forward.1} parent=1 // pred_region
      %s257 = ssub.s32 128, 128
      %258 = vsyncadd [#allocation4], %s257
      %s260 = sshll.u32 [#allocation8], 4
      %s261 = int_to_ptr.vmem [resolvable:$true] %s260
      %263 = dma.vmem_to_hbm [thread:$0]  %s261, 128, %s5, [#allocation4]
    $region37: #{fcnn_forward.1} parent=1 // pred_fallthru
      _
    // Predicated region
    $region38: #{fcnn_forward.1} parent=1 // pred_check
      _
    $region39: #{fcnn_forward.1} parent=1 // pred_check_branch
      %265 = sbr.rel (0) target = $region41
    $region40: #{fcnn_forward.1} parent=1 // pred_region
      %266 = dma.done [#allocation4], 128
    $region41: #{fcnn_forward.1} parent=1 // pred_fallthru
      _
    %267 = vsyncpa [#allocation3], 1
    %268 = vsyncpa [#allocation6], 1
    %269 = vsyncpa [#allocation4], 1

</llo_original>
